<compile_context>
chip_gen: v5e
topology: v5e:2x2
jax: 0.10.0
libtpu: 0.0.40
codegen_flags: <defaults>
</compile_context>

<pallas_src>
import functools

import jax
import jax.numpy as jnp
from jax.experimental import pallas as pl
from jax.experimental.pallas import tpu as pltpu


# ----------------------------------------------------------------------------
# Kernel 1: teacher logits = x @ W_t, D split across cores + D-tiled reduction
# ----------------------------------------------------------------------------
def _teacher_matmul_kernel(x_ref, w_ref, part_ref):
    """Grid = (n_split, n_inner).

    Axis 0 ("parallel") splits D into n_split contiguous halves so v7x can
    shard the W_t HBM stream across its two TensorCores; axis 1 ("arbitrary")
    walks that half's D-tiles as a reduction.  The partial-logit output block
    (1, B, K) is resident across axis 1 and used directly as the accumulator.
    """
    k = pl.program_id(1)

    @pl.when(k == 0)
    def _init():
        part_ref[...] = jnp.zeros_like(part_ref)

    # bf16 feeds (half the HBM bytes on the dominant W_t stream), f32 MXU acc.
    part_ref[0] += jnp.dot(x_ref[...], w_ref[...],
                           preferred_element_type=jnp.float32)


# ----------------------------------------------------------------------------
# Kernel 2: tiny fused epilogue — combine partials, argmax, 2x CE, blend
# ----------------------------------------------------------------------------
def _loss_epilogue_kernel(n_split, part_ref, bt_ref, cls_ref, dist_ref,
                          labels_ref, ratio_ref, loss_ref):
    B, K = cls_ref.shape

    # Combine per-core partial teacher logits and add the bias once.
    t_logits = part_ref[0]
    for s in range(1, n_split):
        t_logits = t_logits + part_ref[s]
    t_logits = t_logits + bt_ref[...]

    iota = jax.lax.broadcasted_iota(jnp.int32, (B, K), 1)

    # teacher_labels = argmax(teacher_outputs, dim=1); first-max tie-break,
    # same convention as torch.argmax.
    t_max = jnp.max(t_logits, axis=1, keepdims=True)
    t_idx = jnp.min(jnp.where(t_logits == t_max, iota, K), axis=1,
                    keepdims=True)                      # [B, 1] int32
    t_onehot = (iota == t_idx).astype(jnp.float32)      # [B, K]

    def cross_entropy(logits, onehot):                  # nn.CrossEntropyLoss
        m = jnp.max(logits, axis=1, keepdims=True)      # (mean reduction)
        lse = m + jnp.log(jnp.sum(jnp.exp(logits - m), axis=1, keepdims=True))
        picked = jnp.sum(logits * onehot, axis=1, keepdims=True)
        return jnp.mean(lse - picked)

    onehot = (iota == labels_ref[...]).astype(jnp.float32)
    base_loss = cross_entropy(cls_ref[...], onehot)
    teacher_loss = cross_entropy(dist_ref[...], t_onehot)

    ratio = ratio_ref[0]
    # (1,1) f32 VMEM output (single masked store; an SMEM scalar output would
    # be cosmetically nicer but this is negligible).
    loss_ref[0, 0] = ratio * base_loss + (1.0 - ratio) * teacher_loss


# ----------------------------------------------------------------------------
# One-time teacher preparation (hoisted off the per-call path)
# ----------------------------------------------------------------------------
_VMEM_TILE_BUDGET = 28 << 20      # double-buffered streaming tiles; safe on
                                  # v7x (64 MiB physical) and v5e/v6e (128 MiB)


def _choose_d_tile(D, K, B, budget_bytes):
    """Largest D-tile (multiple of 128, or full D) whose double-buffered x/W
    blocks fit `budget_bytes`, preferring tiles that divide D exactly (no
    padding) and give an even tile count (enables the 2-way core split)."""
    def need(t):
        # double-buffered bf16 x + W tiles, double-buffered f32 partial block
        return 4 * B * t + 4 * t * K + 8 * B * K + (1 << 20)

    if need(D) <= budget_bytes:
        return D, D                              # single block covers all of D

    t_max = (budget_bytes - 8 * B * K - (1 << 20)) // (4 * (B + K))
    t_max = max(128, (t_max // 128) * 128)

    best_any = None
    best_even = None
    for t in range(t_max, 127, -128):
        if D % t == 0:
            if best_any is None:
                best_any = t
            if (D // t) % 2 == 0:
                best_even = t
                break
    if best_even is not None and 2 * best_even >= best_any:
        return best_even, D
    if best_any is not None:
        return best_any, D
    # No clean 128-multiple divisor of D: pad D up to a multiple of t_max.
    # (The W pad below is one-time; the per-call x pad only triggers here.)
    Dp = ((D + t_max - 1) // t_max) * t_max
    return t_max, Dp


def prepare_teacher(teacher_w, teacher_b, *, batch_size, d_tile_override=None):
    """One-time preprocessing: bf16 cast of W_t, D-tile choice, optional
    one-time D padding.  Call once at setup, reuse for every loss call."""
    D, K = teacher_w.shape
    if d_tile_override is not None:
        tD = int(d_tile_override)
        assert tD == D or tD % 128 == 0, "d_tile_override must be a 128-multiple"
        Dp = ((D + tD - 1) // tD) * tD
    else:
        tD, Dp = _choose_d_tile(D, K, batch_size, _VMEM_TILE_BUDGET)

    wt = teacher_w.astype(jnp.bfloat16)                 # single cast pass
    if Dp != D:
        wt = jnp.pad(wt, ((0, Dp - D), (0, 0)))         # one-time, not per-call
    bt = teacher_b.reshape(1, K).astype(jnp.float32)

    n_k = Dp // tD
    n_split = 2 if (n_k >= 2 and n_k % 2 == 0) else 1
    return {"w": wt, "b": bt, "D": D, "Dp": Dp, "tD": tD, "K": K,
            "B": batch_size, "n_split": n_split}


# ----------------------------------------------------------------------------
# Per-call loss
# ----------------------------------------------------------------------------
def hard_distillation_loss(inputs, outputs_cls, outputs_dist, labels, teacher,
                           *, ratio=0.5):
    """inputs: [B, C, H, W]; outputs_*: [B, K]; labels: [B] int;
    teacher: dict from prepare_teacher()."""
    B = inputs.shape[0]
    assert B == teacher["B"], "prepare_teacher() was built for a different batch"
    D, Dp, tD, K = teacher["D"], teacher["Dp"], teacher["tD"], teacher["K"]
    n_split = teacher["n_split"]
    n_k = Dp // tD
    n_inner = n_k // n_split

    # Flatten (same order as torch x.flatten(1)) + single bf16 cast.
    x = inputs.reshape(B, D).astype(jnp.bfloat16)
    if Dp != D:                        # only when no clean 128-multiple tiling
        x = jnp.pad(x, ((0, 0), (0, Dp - D)))

    need = 4 * B * tD + 4 * tD * K + 8 * B * K + (2 << 20)
    vmem_limit = int(min(max(2 * need, 32 << 20), 48 << 20))

    # ---- kernel 1: teacher partial logits (bandwidth-dominant part) --------
    partials = pl.pallas_call(
        _teacher_matmul_kernel,
        out_shape=jax.ShapeDtypeStruct((n_split, B, K), jnp.float32),
        grid_spec=pltpu.PrefetchScalarGridSpec(
            num_scalar_prefetch=0,
            grid=(n_split, n_inner),
            in_specs=[
                pl.BlockSpec((B, tD), lambda c, k: (0, c * n_inner + k)),
                pl.BlockSpec((tD, K), lambda c, k: (c * n_inner + k, 0)),
            ],
            out_specs=pl.BlockSpec((1, B, K), lambda c, k: (c, 0, 0)),
        ),
        compiler_params=pltpu.CompilerParams(
            dimension_semantics=("parallel", "arbitrary"),
            vmem_limit_bytes=vmem_limit),
        cost_estimate=pl.CostEstimate(
            flops=2 * B * Dp * K,
            transcendentals=0,
            bytes_accessed=(B * Dp + Dp * K) * 2 + n_split * B * K * 4),
    )(x, teacher["w"])

    # ---- kernel 2: combine partials + argmax + both CEs + blend ------------
    labels_2d = labels.reshape(B, 1).astype(jnp.int32)
    ratio_arr = jnp.full((1,), ratio, dtype=jnp.float32)
    cls_f = outputs_cls.astype(jnp.float32)
    dist_f = outputs_dist.astype(jnp.float32)

    loss = pl.pallas_call(
        functools.partial(_loss_epilogue_kernel, n_split),
        out_shape=jax.ShapeDtypeStruct((1, 1), jnp.float32),
        grid_spec=pltpu.PrefetchScalarGridSpec(
            num_scalar_prefetch=0,
            grid=(1,),
            in_specs=[
                pl.BlockSpec((n_split, B, K), lambda i: (0, 0, 0)),  # partials
                pl.BlockSpec((1, K), lambda i: (0, 0)),              # teacher b
                pl.BlockSpec((B, K), lambda i: (0, 0)),              # cls
                pl.BlockSpec((B, K), lambda i: (0, 0)),              # dist
                pl.BlockSpec((B, 1), lambda i: (0, 0)),              # labels
                pl.BlockSpec(memory_space=pltpu.MemorySpace.SMEM),   # ratio
            ],
            out_specs=pl.BlockSpec((1, 1), lambda i: (0, 0)),
        ),
        compiler_params=pltpu.CompilerParams(
            dimension_semantics=("arbitrary",)),
        cost_estimate=pl.CostEstimate(
            flops=8 * B * K,
            transcendentals=2 * B * K,
            bytes_accessed=(n_split + 3) * B * K * 4),
    )(partials, teacher["b"], cls_f, dist_f, labels_2d, ratio_arr)
    return loss[0, 0]


# ----------------------------------------------------------------------------
# Pure-JAX reference (teacher matmul in the same bf16-in / f32-acc precision
# as the kernel so the hard teacher labels match exactly).
# ----------------------------------------------------------------------------
def _reference(inputs, outputs_cls, outputs_dist, labels, teacher_w, teacher_b,
               ratio=0.5):
    B = inputs.shape[0]
    x_flat = inputs.reshape(B, -1)
    t_logits = jnp.dot(x_flat.astype(jnp.bfloat16),
                       teacher_w.astype(jnp.bfloat16),
                       preferred_element_type=jnp.float32) + teacher_b
    t_labels = jnp.argmax(t_logits, axis=1)

    def ce(logits, lab):
        logp = jax.nn.log_softmax(logits.astype(jnp.float32), axis=1)
        return -jnp.mean(jnp.take_along_axis(logp, lab[:, None], axis=1))

    return ratio * ce(outputs_cls, labels) + (1 - ratio) * ce(outputs_dist,
                                                              t_labels)


if __name__ == "__main__":
    B, C, H, W, K = 8, 4, 16, 16, 16
    D = C * H * W

    key = jax.random.PRNGKey(0)
    k1, k2, k3, k4, k5, k6 = jax.random.split(key, 6)

    inputs = jax.random.normal(k1, (B, C, H, W), dtype=jnp.float32)
    outputs_cls = jax.random.normal(k2, (B, K), dtype=jnp.float32)
    outputs_dist = jax.random.normal(k3, (B, K), dtype=jnp.float32)
    labels = jax.random.randint(k4, (B,), 0, K, dtype=jnp.int32)

    # deterministic synthetic teacher (linear classifier over flattened input)
    teacher_w = jax.random.normal(k5, (D, K), dtype=jnp.float32) * 0.02
    teacher_b = jax.random.normal(k6, (K,), dtype=jnp.float32) * 0.02

    ref = _reference(inputs, outputs_cls, outputs_dist, labels,
                     teacher_w, teacher_b, ratio=0.5)

    # 1) auto tiling: demo-sized D fits one tile -> grid (1, 1), no padding.
    teacher = prepare_teacher(teacher_w, teacher_b, batch_size=B)
    loss = hard_distillation_loss(inputs, outputs_cls, outputs_dist, labels,
                                  teacher, ratio=0.5)
    loss = jax.block_until_ready(loss)
    assert jnp.allclose(loss, ref, rtol=1e-5, atol=1e-5), (loss, ref)

    # 2) forced small tile: exercises the D-tiled reduction AND the 2-way
    #    core-split path (grid (2, 4)) that matters on v7x.
    teacher_t = prepare_teacher(teacher_w, teacher_b, batch_size=B,
                                d_tile_override=128)
    loss_t = hard_distillation_loss(inputs, outputs_cls, outputs_dist, labels,
                                    teacher_t, ratio=0.5)
    loss_t = jax.block_until_ready(loss_t)
    assert jnp.allclose(loss_t, ref, rtol=1e-5, atol=1e-5), (loss_t, ref)

    print("KERNEL_OK")
</pallas_src>

<mosaic_0001>
module attributes {stable_mosaic.version = 11 : i64} {
  func.func @_teacher_matmul_kernel(%arg0: i32, %arg1: i32, %arg2: memref<8x1024xbf16, #tpu.memory_space<vmem>>, %arg3: memref<1024x16xbf16, #tpu.memory_space<vmem>>, %arg4: memref<1x8x16xf32, #tpu.memory_space<vmem>>) attributes {dimension_semantics = [#tpu.dimension_semantics<parallel>, #tpu.dimension_semantics<arbitrary>], iteration_bounds = array<i64: 1, 1>, scalar_prefetch = 0 : i64, scratch_operands = 0 : i64, tpu.core_type = #tpu.core_type<tc>, window_params = [{transform_indices = @transform_0, window_bounds = array<i64: 8, 1024>}, {transform_indices = @transform_1, window_bounds = array<i64: 1024, 16>}, {transform_indices = @transform_2, window_bounds = array<i64: 1, 8, 16>}]} {
    %c0_i32 = arith.constant 0 : i32
    %0 = arith.cmpi eq, %arg1, %c0_i32 : i32
    %1 = arith.extui %0 : i1 to i32
    %c0_i32_0 = arith.constant 0 : i32
    %2 = arith.cmpi ne, %1, %c0_i32_0 : i32
    scf.if %2 {
      %cst_10 = arith.constant 0.000000e+00 : f32
      %12 = vector.broadcast %cst_10 : f32 to vector<1x8x16xf32>
      %c0_11 = arith.constant 0 : index
      %c0_12 = arith.constant 0 : index
      %c0_13 = arith.constant 0 : index
      %13 = vector.load %arg4[%c0_11, %c0_12, %c0_13] : memref<1x8x16xf32, #tpu.memory_space<vmem>>, vector<1x8x16xf32>
      tpu.vector_store %arg4[%c0_11, %c0_12, %c0_13], %12 {strides = array<i32>} : memref<1x8x16xf32, #tpu.memory_space<vmem>>, vector<1x8x16xf32>,
    } else {
    }
    %c0 = arith.constant 0 : index
    %c0_1 = arith.constant 0 : index
    %c0_2 = arith.constant 0 : index
    %3 = vector.load %arg4[%c0, %c0_1, %c0_2] : memref<1x8x16xf32, #tpu.memory_space<vmem>>, vector<1x8x16xf32>
    %4 = vector.shape_cast %3 : vector<1x8x16xf32> to vector<8x16xf32>
    %c0_3 = arith.constant 0 : index
    %c0_4 = arith.constant 0 : index
    %5 = vector.load %arg2[%c0_3, %c0_4] : memref<8x1024xbf16, #tpu.memory_space<vmem>>, vector<8x1024xbf16>
    %c0_5 = arith.constant 0 : index
    %c0_6 = arith.constant 0 : index
    %6 = vector.load %arg3[%c0_5, %c0_6] : memref<1024x16xbf16, #tpu.memory_space<vmem>>, vector<1024x16xbf16>
    %cst = arith.constant dense<0.000000e+00> : vector<8x16xf32>
    %7 = tpu.matmul %5, %6, %cst {dimension_numbers = #tpu.dot_dimension_numbers<[1], [0], [0], [1], [0, 0, 1, 1], [], []>} : vector<8x1024xbf16>, vector<1024x16xbf16>, vector<8x16xf32> -> vector<8x16xf32>
    %8 = arith.addf %4, %7 : vector<8x16xf32>
    %c0_7 = arith.constant 0 : index
    %c0_8 = arith.constant 0 : index
    %c0_9 = arith.constant 0 : index
    %9 = vector.load %arg4[%c0_7, %c0_8, %c0_9] : memref<1x8x16xf32, #tpu.memory_space<vmem>>, vector<1x8x16xf32>
    %10 = vector.shape_cast %9 : vector<1x8x16xf32> to vector<8x16xf32>
    %11 = vector.shape_cast %8 : vector<8x16xf32> to vector<1x8x16xf32>
    tpu.vector_store %arg4[%c0_7, %c0_8, %c0_9], %11 {strides = array<i32>} : memref<1x8x16xf32, #tpu.memory_space<vmem>>, vector<1x8x16xf32>,
    return
  }
  func.func @transform_0(%arg0: i32, %arg1: i32) -> (i32, i32) {
    %c1_i32 = arith.constant 1 : i32
    %0 = arith.muli %arg0, %c1_i32 : i32
    %1 = arith.addi %0, %arg1 : i32
    %c0_i32 = arith.constant 0 : i32
    %c0_i32_0 = arith.constant 0 : i32
    return %c0_i32, %1 : i32, i32
  }
  func.func @transform_1(%arg0: i32, %arg1: i32) -> (i32, i32) {
    %c1_i32 = arith.constant 1 : i32
    %0 = arith.muli %arg0, %c1_i32 : i32
    %1 = arith.addi %0, %arg1 : i32
    %c0_i32 = arith.constant 0 : i32
    %c0_i32_0 = arith.constant 0 : i32
    return %1, %c0_i32 : i32, i32
  }
  func.func @transform_2(%arg0: i32, %arg1: i32) -> (i32, i32, i32) {
    %c0_i32 = arith.constant 0 : i32
    %c0_i32_0 = arith.constant 0 : i32
    %c0_i32_1 = arith.constant 0 : i32
    return %arg0, %c0_i32, %c0_i32_0 : i32, i32, i32
  }
}

</mosaic_0001>

<llo_original>
// kernel: tpu_custom_call.1
$region0: #{tpu_custom_call.1}
  #allocation0 [shape = 'u32[]', space=smem, size = 0x4, offset = 0x4, fixed_abs, tag = 'smem constant byte address 0x4 - core index']
  #allocation1 [shape = 'u32[72,128]{1,0:T(1,128)}', space=vmem, size = 0x9000, scoped, tag = 'internal scratch']
  %s0 = inlined_call_operand.vmem [shape: bf16[8,1024], index: 0, kind: input, shape index: {}]
  %s1 = inlined_call_operand.vmem [shape: bf16[1024,16], index: 1, kind: input, shape index: {}]
  %s2 = inlined_call_operand.hbm [shape: f32[1,8,16], index: 2, kind: output, shape index: {}]
  %s3 = sld [smem:[#allocation0]]
  $region22: #{tpu_custom_call.1} parent=0
    _
  %s5 = ssub.s32 1, %s3
  %s6 = scalar_select 0, %s5, %s3
  $region1: #{tpu_custom_call.1} parent=0
    #allocation2 [shape = 'u8[4096]{0}', space=vmem, size = 0x1000, scoped, tag = 'output window, operand 0, single buffered']
    #allocation3 [shape = 's32[1]{0}', space=sflag, size = 0x4, scoped, tag = 'scoped memory for tpu_custom_call.1']
    %7 = vsyncpa [#allocation3], 0
    // Predicated region
    $region2: #{tpu_custom_call.1} parent=1 // pred_check
      _
    $region3: #{tpu_custom_call.1} parent=1 // pred_check_branch
      %9 = sbr.rel (0) target = $region5
    $region4: #{tpu_custom_call.1} parent=1 // pred_region
      %s10 = sadd.s32 0, 0
      %s11 = smul.u32 8, %s10
      %p12 = scmp.lt.s32.totalorder %s11, 7
      %s13 = scalar_select %p12, %s11, 7
      %s14 = smul.addr %s13, 4
      %s15 = scalar_lea.vmem %s0, %s14
      %s16 = sadd.s32 0, 0
      %s17 = smul.u32 8, %s16
    $region5: #{tpu_custom_call.1} parent=1 // pred_fallthru
      _
    // Predicated region
    $region6: #{tpu_custom_call.1} parent=1 // pred_check
      _
    $region7: #{tpu_custom_call.1} parent=1 // pred_check_branch
      %19 = sbr.rel (0) target = $region9
    $region8: #{tpu_custom_call.1} parent=1 // pred_region
      %s20 = sadd.s32 0, 0
      %s21 = smul.u32 128, %s20
      %p22 = scmp.lt.s32.totalorder %s21, 127
      %s23 = scalar_select %p22, %s21, 127
      %s24 = smul.addr %s23, 4
      %s25 = scalar_lea.vmem %s1, %s24
      %s26 = sadd.s32 0, 0
      %s27 = smul.u32 128, %s26
    $region9: #{tpu_custom_call.1} parent=1 // pred_fallthru
      _
    %s28 = sadd.s32 0, 0
    %s29 = smul.u32 8, %s28
    %p30 = scmp.lt.s32.totalorder %s29, 7
    %s31 = scalar_select %p30, %s29, 7
    %s32 = smul.addr %s31, 4
    %s33 = scalar_lea.vmem %s0, %s32
    %s34 = sadd.s32 0, 0
    %s35 = smul.u32 128, %s34
    %p36 = scmp.lt.s32.totalorder %s35, 127
    %s37 = scalar_select %p36, %s35, 127
    %s38 = smul.addr %s37, 4
    %s39 = scalar_lea.vmem %s1, %s38
    %s40 = sadd.s32 0, 0
    %s41 = smul.u32 8, %s40
    %p42 = scmp.lt.s32.totalorder %s41, 7
    %s43 = scalar_select %p42, %s41, 7
    %s44 = smul.addr %s43, 4
    %s45 = scalar_lea.vmem %s0, %s44
    %s46 = sadd.s32 0, 0
    %s47 = smul.u32 8, %s46
    %s48 = sadd.s32 0, 0
    %s49 = smul.u32 128, %s48
    %p50 = scmp.lt.s32.totalorder %s49, 127
    %s51 = scalar_select %p50, %s49, 127
    %s52 = smul.addr %s51, 4
    %s53 = scalar_lea.vmem %s1, %s52
    %s54 = sadd.s32 0, 0
    %s55 = smul.u32 128, %s54
    %p56 = scmp.eq.s32.totalorder 0, 0
    // Predicated region
    $region10: #{tpu_custom_call.1} parent=1 // pred_check
      %p57 = pneg %p56
    $region11: #{tpu_custom_call.1} parent=1 // pred_check_branch
      %59 = sbr.rel (%p57) target = $region13
    $region12: #{tpu_custom_call.1} parent=1 // pred_region
      %vm60 = vcmask 130048
      %61 = vst.msk [vmem:[#allocation2] sm:$0xff] %vm60, 0.0
    $region13: #{tpu_custom_call.1} parent=1 // pred_fallthru
      _
    %v62 = vld [vmem:[#allocation2] sm:$0xff]
    %v63 = vld [vmem:[%s45] sm:$0xff]
    %v64 = vld [vmem:[%s45 + $0x8] sm:$0xff]
    %v65 = vld [vmem:[%s45 + $0x10] sm:$0xff]
    %v66 = vld [vmem:[%s45 + $0x18] sm:$0xff]
    %v67 = vld [vmem:[%s53] sm:$0xf]
    %v68 = vld [vmem:[%s53 + $0x4] sm:$0xf]
    %v69 = vld [vmem:[%s53 + $0x8] sm:$0xf]
    %v70 = vld [vmem:[%s53 + $0xc] sm:$0xf]
    %v71 = vld [vmem:[%s53 + $0x10] sm:$0xf]
    %v72 = vld [vmem:[%s53 + $0x14] sm:$0xf]
    %v73 = vld [vmem:[%s53 + $0x18] sm:$0xf]
    %v74 = vld [vmem:[%s53 + $0x1c] sm:$0xf]
    %v75 = vld [vmem:[%s53 + $0x20] sm:$0xf]
    %v76 = vld [vmem:[%s53 + $0x24] sm:$0xf]
    %v77 = vld [vmem:[%s53 + $0x28] sm:$0xf]
    %v78 = vld [vmem:[%s53 + $0x2c] sm:$0xf]
    %v79 = vld [vmem:[%s53 + $0x30] sm:$0xf]
    %v80 = vld [vmem:[%s53 + $0x34] sm:$0xf]
    %v81 = vld [vmem:[%s53 + $0x38] sm:$0xf]
    %v82 = vld [vmem:[%s53 + $0x3c] sm:$0xf]
    %v83 = vld [vmem:[%s53 + $0x40] sm:$0xf]
    %v84 = vld [vmem:[%s53 + $0x44] sm:$0xf]
    %v85 = vld [vmem:[%s53 + $0x48] sm:$0xf]
    %v86 = vld [vmem:[%s53 + $0x4c] sm:$0xf]
    %v87 = vld [vmem:[%s53 + $0x50] sm:$0xf]
    %v88 = vld [vmem:[%s53 + $0x54] sm:$0xf]
    %v89 = vld [vmem:[%s53 + $0x58] sm:$0xf]
    %v90 = vld [vmem:[%s53 + $0x5c] sm:$0xf]
    %v91 = vld [vmem:[%s53 + $0x60] sm:$0xf]
    %v92 = vld [vmem:[%s53 + $0x64] sm:$0xf]
    %v93 = vld [vmem:[%s53 + $0x68] sm:$0xf]
    %v94 = vld [vmem:[%s53 + $0x6c] sm:$0xf]
    %v95 = vld [vmem:[%s53 + $0x70] sm:$0xf]
    %v96 = vld [vmem:[%s53 + $0x74] sm:$0xf]
    %v97 = vld [vmem:[%s53 + $0x78] sm:$0xf]
    %v98 = vld [vmem:[%s53 + $0x7c] sm:$0xf]
    %v99 = vld [vmem:[%s53 + $0x80] sm:$0xf]
    %v100 = vld [vmem:[%s53 + $0x84] sm:$0xf]
    %v101 = vld [vmem:[%s53 + $0x88] sm:$0xf]
    %v102 = vld [vmem:[%s53 + $0x8c] sm:$0xf]
    %v103 = vld [vmem:[%s53 + $0x90] sm:$0xf]
    %v104 = vld [vmem:[%s53 + $0x94] sm:$0xf]
    %v105 = vld [vmem:[%s53 + $0x98] sm:$0xf]
    %v106 = vld [vmem:[%s53 + $0x9c] sm:$0xf]
    %v107 = vld [vmem:[%s53 + $0xa0] sm:$0xf]
    %v108 = vld [vmem:[%s53 + $0xa4] sm:$0xf]
    %v109 = vld [vmem:[%s53 + $0xa8] sm:$0xf]
    %v110 = vld [vmem:[%s53 + $0xac] sm:$0xf]
    %v111 = vld [vmem:[%s53 + $0xb0] sm:$0xf]
    %v112 = vld [vmem:[%s53 + $0xb4] sm:$0xf]
    %v113 = vld [vmem:[%s53 + $0xb8] sm:$0xf]
    %v114 = vld [vmem:[%s53 + $0xbc] sm:$0xf]
    %v115 = vld [vmem:[%s53 + $0xc0] sm:$0xf]
    %v116 = vld [vmem:[%s53 + $0xc4] sm:$0xf]
    %v117 = vld [vmem:[%s53 + $0xc8] sm:$0xf]
    %v118 = vld [vmem:[%s53 + $0xcc] sm:$0xf]
    %v119 = vld [vmem:[%s53 + $0xd0] sm:$0xf]
    %v120 = vld [vmem:[%s53 + $0xd4] sm:$0xf]
    %v121 = vld [vmem:[%s53 + $0xd8] sm:$0xf]
    %v122 = vld [vmem:[%s53 + $0xdc] sm:$0xf]
    %v123 = vld [vmem:[%s53 + $0xe0] sm:$0xf]
    %v124 = vld [vmem:[%s53 + $0xe4] sm:$0xf]
    %v125 = vld [vmem:[%s53 + $0xe8] sm:$0xf]
    %v126 = vld [vmem:[%s53 + $0xec] sm:$0xf]
    %v127 = vld [vmem:[%s53 + $0xf0] sm:$0xf]
    %v128 = vld [vmem:[%s53 + $0xf4] sm:$0xf]
    %v129 = vld [vmem:[%s53 + $0xf8] sm:$0xf]
    %v130 = vld [vmem:[%s53 + $0xfc] sm:$0xf]
    %v131 = vld [vmem:[%s53 + $0x100] sm:$0xf]
    %v132 = vld [vmem:[%s53 + $0x104] sm:$0xf]
    %v133 = vld [vmem:[%s53 + $0x108] sm:$0xf]
    %v134 = vld [vmem:[%s53 + $0x10c] sm:$0xf]
    %v135 = vld [vmem:[%s53 + $0x110] sm:$0xf]
    %v136 = vld [vmem:[%s53 + $0x114] sm:$0xf]
    %v137 = vld [vmem:[%s53 + $0x118] sm:$0xf]
    %v138 = vld [vmem:[%s53 + $0x11c] sm:$0xf]
    %v139 = vld [vmem:[%s53 + $0x120] sm:$0xf]
    %v140 = vld [vmem:[%s53 + $0x124] sm:$0xf]
    %v141 = vld [vmem:[%s53 + $0x128] sm:$0xf]
    %v142 = vld [vmem:[%s53 + $0x12c] sm:$0xf]
    %v143 = vld [vmem:[%s53 + $0x130] sm:$0xf]
    %v144 = vld [vmem:[%s53 + $0x134] sm:$0xf]
    %v145 = vld [vmem:[%s53 + $0x138] sm:$0xf]
    %v146 = vld [vmem:[%s53 + $0x13c] sm:$0xf]
    %v147 = vld [vmem:[%s53 + $0x140] sm:$0xf]
    %v148 = vld [vmem:[%s53 + $0x144] sm:$0xf]
    %v149 = vld [vmem:[%s53 + $0x148] sm:$0xf]
    %v150 = vld [vmem:[%s53 + $0x14c] sm:$0xf]
    %v151 = vld [vmem:[%s53 + $0x150] sm:$0xf]
    %v152 = vld [vmem:[%s53 + $0x154] sm:$0xf]
    %v153 = vld [vmem:[%s53 + $0x158] sm:$0xf]
    %v154 = vld [vmem:[%s53 + $0x15c] sm:$0xf]
    %v155 = vld [vmem:[%s53 + $0x160] sm:$0xf]
    %v156 = vld [vmem:[%s53 + $0x164] sm:$0xf]
    %v157 = vld [vmem:[%s53 + $0x168] sm:$0xf]
    %v158 = vld [vmem:[%s53 + $0x16c] sm:$0xf]
    %v159 = vld [vmem:[%s53 + $0x170] sm:$0xf]
    %v160 = vld [vmem:[%s53 + $0x174] sm:$0xf]
    %v161 = vld [vmem:[%s53 + $0x178] sm:$0xf]
    %v162 = vld [vmem:[%s53 + $0x17c] sm:$0xf]
    %v163 = vld [vmem:[%s53 + $0x180] sm:$0xf]
    %v164 = vld [vmem:[%s53 + $0x184] sm:$0xf]
    %v165 = vld [vmem:[%s53 + $0x188] sm:$0xf]
    %v166 = vld [vmem:[%s53 + $0x18c] sm:$0xf]
    %v167 = vld [vmem:[%s53 + $0x190] sm:$0xf]
    %v168 = vld [vmem:[%s53 + $0x194] sm:$0xf]
    %v169 = vld [vmem:[%s53 + $0x198] sm:$0xf]
    %v170 = vld [vmem:[%s53 + $0x19c] sm:$0xf]
    %v171 = vld [vmem:[%s53 + $0x1a0] sm:$0xf]
    %v172 = vld [vmem:[%s53 + $0x1a4] sm:$0xf]
    %v173 = vld [vmem:[%s53 + $0x1a8] sm:$0xf]
    %v174 = vld [vmem:[%s53 + $0x1ac] sm:$0xf]
    %v175 = vld [vmem:[%s53 + $0x1b0] sm:$0xf]
    %v176 = vld [vmem:[%s53 + $0x1b4] sm:$0xf]
    %v177 = vld [vmem:[%s53 + $0x1b8] sm:$0xf]
    %v178 = vld [vmem:[%s53 + $0x1bc] sm:$0xf]
    %v179 = vld [vmem:[%s53 + $0x1c0] sm:$0xf]
    %v180 = vld [vmem:[%s53 + $0x1c4] sm:$0xf]
    %v181 = vld [vmem:[%s53 + $0x1c8] sm:$0xf]
    %v182 = vld [vmem:[%s53 + $0x1cc] sm:$0xf]
    %v183 = vld [vmem:[%s53 + $0x1d0] sm:$0xf]
    %v184 = vld [vmem:[%s53 + $0x1d4] sm:$0xf]
    %v185 = vld [vmem:[%s53 + $0x1d8] sm:$0xf]
    %v186 = vld [vmem:[%s53 + $0x1dc] sm:$0xf]
    %v187 = vld [vmem:[%s53 + $0x1e0] sm:$0xf]
    %v188 = vld [vmem:[%s53 + $0x1e4] sm:$0xf]
    %v189 = vld [vmem:[%s53 + $0x1e8] sm:$0xf]
    %v190 = vld [vmem:[%s53 + $0x1ec] sm:$0xf]
    %v191 = vld [vmem:[%s53 + $0x1f0] sm:$0xf]
    %v192 = vld [vmem:[%s53 + $0x1f4] sm:$0xf]
    %v193 = vld [vmem:[%s53 + $0x1f8] sm:$0xf]
    %v194 = vld [vmem:[%s53 + $0x1fc] sm:$0xf]
    %v199 = vunpack.c.l.b16 %v63
    %v200 = vunpack.c.h.b16 %v63
    %v201 = vunpack.c.l.b16 %v64
    %v202 = vunpack.c.h.b16 %v64
    %v203 = vunpack.c.l.b16 %v65
    %v204 = vunpack.c.h.b16 %v65
    %v205 = vunpack.c.l.b16 %v66
    %v206 = vunpack.c.h.b16 %v66
    %v207 = vpack.c.b16 %v199, %v199
    %v208 = vpack.c.b16 %v200, %v200
    %v209 = vpack.c.b16 %v201, %v201
    %v210 = vpack.c.b16 %v202, %v202
    %v211 = vpack.c.b16 %v203, %v203
    %v212 = vpack.c.b16 %v204, %v204
    %v213 = vpack.c.b16 %v205, %v205
    %v214 = vpack.c.b16 %v206, %v206
    %v351 = vunpack.c.l.b16 %v67
    %v352 = vunpack.c.l.b16 %v68
    %v353 = vunpack.c.l.b16 %v69
    %v354 = vunpack.c.l.b16 %v70
    %v355 = vunpack.c.l.b16 %v71
    %v356 = vunpack.c.l.b16 %v72
    %v357 = vunpack.c.l.b16 %v73
    %v358 = vunpack.c.l.b16 %v74
    %v359 = vunpack.c.l.b16 %v75
    %v360 = vunpack.c.l.b16 %v76
    %v361 = vunpack.c.l.b16 %v77
    %v362 = vunpack.c.l.b16 %v78
    %v363 = vunpack.c.l.b16 %v79
    %v364 = vunpack.c.l.b16 %v80
    %v365 = vunpack.c.l.b16 %v81
    %v366 = vunpack.c.l.b16 %v82
    %v367 = vunpack.c.l.b16 %v83
    %v368 = vunpack.c.l.b16 %v84
    %v369 = vunpack.c.l.b16 %v85
    %v370 = vunpack.c.l.b16 %v86
    %v371 = vunpack.c.l.b16 %v87
    %v372 = vunpack.c.l.b16 %v88
    %v373 = vunpack.c.l.b16 %v89
    %v374 = vunpack.c.l.b16 %v90
    %v375 = vunpack.c.l.b16 %v91
    %v376 = vunpack.c.l.b16 %v92
    %v377 = vunpack.c.l.b16 %v93
    %v378 = vunpack.c.l.b16 %v94
    %v379 = vunpack.c.l.b16 %v95
    %v380 = vunpack.c.l.b16 %v96
    %v381 = vunpack.c.l.b16 %v97
    %v382 = vunpack.c.l.b16 %v98
    %v383 = vunpack.c.l.b16 %v99
    %v384 = vunpack.c.l.b16 %v100
    %v385 = vunpack.c.l.b16 %v101
    %v386 = vunpack.c.l.b16 %v102
    %v387 = vunpack.c.l.b16 %v103
    %v388 = vunpack.c.l.b16 %v104
    %v389 = vunpack.c.l.b16 %v105
    %v390 = vunpack.c.l.b16 %v106
    %v391 = vunpack.c.l.b16 %v107
    %v392 = vunpack.c.l.b16 %v108
    %v393 = vunpack.c.l.b16 %v109
    %v394 = vunpack.c.l.b16 %v110
    %v395 = vunpack.c.l.b16 %v111
    %v396 = vunpack.c.l.b16 %v112
    %v397 = vunpack.c.l.b16 %v113
    %v398 = vunpack.c.l.b16 %v114
    %v399 = vunpack.c.l.b16 %v115
    %v400 = vunpack.c.l.b16 %v116
    %v401 = vunpack.c.l.b16 %v117
    %v402 = vunpack.c.l.b16 %v118
    %v403 = vunpack.c.l.b16 %v119
    %v404 = vunpack.c.l.b16 %v120
    %v405 = vunpack.c.l.b16 %v121
    %v406 = vunpack.c.l.b16 %v122
    %v407 = vunpack.c.l.b16 %v123
    %v408 = vunpack.c.l.b16 %v124
    %v409 = vunpack.c.l.b16 %v125
    %v410 = vunpack.c.l.b16 %v126
    %v411 = vunpack.c.l.b16 %v127
    %v412 = vunpack.c.l.b16 %v128
    %v413 = vunpack.c.l.b16 %v129
    %v414 = vunpack.c.l.b16 %v130
    %v415 = vunpack.c.l.b16 %v131
    %v416 = vunpack.c.l.b16 %v132
    %v417 = vunpack.c.l.b16 %v133
    %v418 = vunpack.c.l.b16 %v134
    %v419 = vunpack.c.l.b16 %v135
    %v420 = vunpack.c.l.b16 %v136
    %v421 = vunpack.c.l.b16 %v137
    %v422 = vunpack.c.l.b16 %v138
    %v423 = vunpack.c.l.b16 %v139
    %v424 = vunpack.c.l.b16 %v140
    %v425 = vunpack.c.l.b16 %v141
    %v426 = vunpack.c.l.b16 %v142
    %v427 = vunpack.c.l.b16 %v143
    %v428 = vunpack.c.l.b16 %v144
    %v429 = vunpack.c.l.b16 %v145
    %v430 = vunpack.c.l.b16 %v146
    %v431 = vunpack.c.l.b16 %v147
    %v432 = vunpack.c.l.b16 %v148
    %v433 = vunpack.c.l.b16 %v149
    %v434 = vunpack.c.l.b16 %v150
    %v435 = vunpack.c.l.b16 %v151
    %v436 = vunpack.c.l.b16 %v152
    %v437 = vunpack.c.l.b16 %v153
    %v438 = vunpack.c.l.b16 %v154
    %v439 = vunpack.c.l.b16 %v155
    %v440 = vunpack.c.l.b16 %v156
    %v441 = vunpack.c.l.b16 %v157
    %v442 = vunpack.c.l.b16 %v158
    %v443 = vunpack.c.l.b16 %v159
    %v444 = vunpack.c.l.b16 %v160
    %v445 = vunpack.c.l.b16 %v161
    %v446 = vunpack.c.l.b16 %v162
    %v447 = vunpack.c.l.b16 %v163
    %v448 = vunpack.c.l.b16 %v164
    %v449 = vunpack.c.l.b16 %v165
    %v450 = vunpack.c.l.b16 %v166
    %v451 = vunpack.c.l.b16 %v167
    %v452 = vunpack.c.l.b16 %v168
    %v453 = vunpack.c.l.b16 %v169
    %v454 = vunpack.c.l.b16 %v170
    %v455 = vunpack.c.l.b16 %v171
    %v456 = vunpack.c.l.b16 %v172
    %v457 = vunpack.c.l.b16 %v173
    %v458 = vunpack.c.l.b16 %v174
    %v459 = vunpack.c.l.b16 %v175
    %v460 = vunpack.c.l.b16 %v176
    %v461 = vunpack.c.l.b16 %v177
    %v462 = vunpack.c.l.b16 %v178
    %v463 = vunpack.c.l.b16 %v179
    %v464 = vunpack.c.l.b16 %v180
    %v465 = vunpack.c.l.b16 %v181
    %v466 = vunpack.c.l.b16 %v182
    %v467 = vunpack.c.l.b16 %v183
    %v468 = vunpack.c.l.b16 %v184
    %v469 = vunpack.c.l.b16 %v185
    %v470 = vunpack.c.l.b16 %v186
    %v471 = vunpack.c.l.b16 %v187
    %v472 = vunpack.c.l.b16 %v188
    %v473 = vunpack.c.l.b16 %v189
    %v474 = vunpack.c.l.b16 %v190
    %v475 = vunpack.c.l.b16 %v191
    %v476 = vunpack.c.l.b16 %v192
    %v477 = vunpack.c.l.b16 %v193
    %v478 = vunpack.c.l.b16 %v194
    %v479 = vpack.c.b16 %v352, %v351
    %v480 = vpack.c.b16 %v354, %v353
    %v481 = vpack.c.b16 %v356, %v355
    %v482 = vpack.c.b16 %v358, %v357
    %v483 = vpack.c.b16 %v360, %v359
    %v484 = vpack.c.b16 %v362, %v361
    %v485 = vpack.c.b16 %v364, %v363
    %v486 = vpack.c.b16 %v366, %v365
    %v487 = vpack.c.b16 %v368, %v367
    %v488 = vpack.c.b16 %v370, %v369
    %v489 = vpack.c.b16 %v372, %v371
    %v490 = vpack.c.b16 %v374, %v373
    %v491 = vpack.c.b16 %v376, %v375
    %v492 = vpack.c.b16 %v378, %v377
    %v493 = vpack.c.b16 %v380, %v379
    %v494 = vpack.c.b16 %v382, %v381
    %v495 = vpack.c.b16 %v384, %v383
    %v496 = vpack.c.b16 %v386, %v385
    %v497 = vpack.c.b16 %v388, %v387
    %v498 = vpack.c.b16 %v390, %v389
    %v499 = vpack.c.b16 %v392, %v391
    %v500 = vpack.c.b16 %v394, %v393
    %v501 = vpack.c.b16 %v396, %v395
    %v502 = vpack.c.b16 %v398, %v397
    %v503 = vpack.c.b16 %v400, %v399
    %v504 = vpack.c.b16 %v402, %v401
    %v505 = vpack.c.b16 %v404, %v403
    %v506 = vpack.c.b16 %v406, %v405
    %v507 = vpack.c.b16 %v408, %v407
    %v508 = vpack.c.b16 %v410, %v409
    %v509 = vpack.c.b16 %v412, %v411
    %v510 = vpack.c.b16 %v414, %v413
    %v511 = vpack.c.b16 %v416, %v415
    %v512 = vpack.c.b16 %v418, %v417
    %v513 = vpack.c.b16 %v420, %v419
    %v514 = vpack.c.b16 %v422, %v421
    %v515 = vpack.c.b16 %v424, %v423
    %v516 = vpack.c.b16 %v426, %v425
    %v517 = vpack.c.b16 %v428, %v427
    %v518 = vpack.c.b16 %v430, %v429
    %v519 = vpack.c.b16 %v432, %v431
    %v520 = vpack.c.b16 %v434, %v433
    %v521 = vpack.c.b16 %v436, %v435
    %v522 = vpack.c.b16 %v438, %v437
    %v523 = vpack.c.b16 %v440, %v439
    %v524 = vpack.c.b16 %v442, %v441
    %v525 = vpack.c.b16 %v444, %v443
    %v526 = vpack.c.b16 %v446, %v445
    %v527 = vpack.c.b16 %v448, %v447
    %v528 = vpack.c.b16 %v450, %v449
    %v529 = vpack.c.b16 %v452, %v451
    %v530 = vpack.c.b16 %v454, %v453
    %v531 = vpack.c.b16 %v456, %v455
    %v532 = vpack.c.b16 %v458, %v457
    %v533 = vpack.c.b16 %v460, %v459
    %v534 = vpack.c.b16 %v462, %v461
    %v535 = vpack.c.b16 %v464, %v463
    %v536 = vpack.c.b16 %v466, %v465
    %v537 = vpack.c.b16 %v468, %v467
    %v538 = vpack.c.b16 %v470, %v469
    %v539 = vpack.c.b16 %v472, %v471
    %v540 = vpack.c.b16 %v474, %v473
    %v541 = vpack.c.b16 %v476, %v475
    %v542 = vpack.c.b16 %v478, %v477
    %607 = vmatpush.bf16.msra.mxu0 %v486
    %608 = vmatpush.bf16.msra.mxu0 %v485
    %609 = vmatpush.bf16.msra.mxu0 %v484
    %610 = vmatpush.bf16.msra.mxu0 %v483
    %611 = vmatpush.bf16.msra.mxu0 %v482
    %612 = vmatpush.bf16.msra.mxu0 %v481
    %613 = vmatpush.bf16.msra.mxu0 %v480
    %614 = vmatpush.bf16.msra.mxu0 %v479
    %615 = vmatmul.bf16.gmra.mxu0 %v207
    %v616 = vpop.f32.mrf.mxu0
    %v617 = vadd.f32 0.0, %v616
    %v618 = vpop.f32.mrf.mxu0
    %619 = vdwg.mxu0
    %620 = vmatpush.bf16.msra.mxu0 %v494
    %621 = vmatpush.bf16.msra.mxu0 %v493
    %622 = vmatpush.bf16.msra.mxu0 %v492
    %623 = vmatpush.bf16.msra.mxu0 %v491
    %624 = vmatpush.bf16.msra.mxu0 %v490
    %625 = vmatpush.bf16.msra.mxu0 %v489
    %626 = vmatpush.bf16.msra.mxu0 %v488
    %627 = vmatpush.bf16.msra.mxu0 %v487
    %628 = vmatmul.bf16.gmra.mxu0 %v208
    %v629 = vpop.f32.mrf.mxu0
    %v630 = vadd.f32 %v617, %v629
    %v631 = vpop.f32.mrf.mxu0
    %632 = vdwg.mxu0
    %633 = vmatpush.bf16.msra.mxu0 %v502
    %634 = vmatpush.bf16.msra.mxu0 %v501
    %635 = vmatpush.bf16.msra.mxu0 %v500
    %636 = vmatpush.bf16.msra.mxu0 %v499
    %637 = vmatpush.bf16.msra.mxu0 %v498
    %638 = vmatpush.bf16.msra.mxu0 %v497
    %639 = vmatpush.bf16.msra.mxu0 %v496
    %640 = vmatpush.bf16.msra.mxu0 %v495
    %641 = vmatmul.bf16.gmra.mxu0 %v209
    %v642 = vpop.f32.mrf.mxu0
    %v643 = vadd.f32 %v630, %v642
    %v644 = vpop.f32.mrf.mxu0
    %645 = vdwg.mxu0
    %646 = vmatpush.bf16.msra.mxu0 %v510
    %647 = vmatpush.bf16.msra.mxu0 %v509
    %648 = vmatpush.bf16.msra.mxu0 %v508
    %649 = vmatpush.bf16.msra.mxu0 %v507
    %650 = vmatpush.bf16.msra.mxu0 %v506
    %651 = vmatpush.bf16.msra.mxu0 %v505
    %652 = vmatpush.bf16.msra.mxu0 %v504
    %653 = vmatpush.bf16.msra.mxu0 %v503
    %654 = vmatmul.bf16.gmra.mxu0 %v210
    %v655 = vpop.f32.mrf.mxu0
    %v656 = vadd.f32 %v643, %v655
    %v657 = vpop.f32.mrf.mxu0
    %658 = vdwg.mxu0
    %659 = vmatpush.bf16.msra.mxu0 %v518
    %660 = vmatpush.bf16.msra.mxu0 %v517
    %661 = vmatpush.bf16.msra.mxu0 %v516
    %662 = vmatpush.bf16.msra.mxu0 %v515
    %663 = vmatpush.bf16.msra.mxu0 %v514
    %664 = vmatpush.bf16.msra.mxu0 %v513
    %665 = vmatpush.bf16.msra.mxu0 %v512
    %666 = vmatpush.bf16.msra.mxu0 %v511
    %667 = vmatmul.bf16.gmra.mxu0 %v211
    %v668 = vpop.f32.mrf.mxu0
    %v669 = vadd.f32 %v656, %v668
    %v670 = vpop.f32.mrf.mxu0
    %671 = vdwg.mxu0
    %672 = vmatpush.bf16.msra.mxu0 %v526
    %673 = vmatpush.bf16.msra.mxu0 %v525
    %674 = vmatpush.bf16.msra.mxu0 %v524
    %675 = vmatpush.bf16.msra.mxu0 %v523
    %676 = vmatpush.bf16.msra.mxu0 %v522
    %677 = vmatpush.bf16.msra.mxu0 %v521
    %678 = vmatpush.bf16.msra.mxu0 %v520
    %679 = vmatpush.bf16.msra.mxu0 %v519
    %680 = vmatmul.bf16.gmra.mxu0 %v212
    %v681 = vpop.f32.mrf.mxu0
    %v682 = vadd.f32 %v669, %v681
    %v683 = vpop.f32.mrf.mxu0
    %684 = vdwg.mxu0
    %685 = vmatpush.bf16.msra.mxu0 %v534
    %686 = vmatpush.bf16.msra.mxu0 %v533
    %687 = vmatpush.bf16.msra.mxu0 %v532
    %688 = vmatpush.bf16.msra.mxu0 %v531
    %689 = vmatpush.bf16.msra.mxu0 %v530
    %690 = vmatpush.bf16.msra.mxu0 %v529
    %691 = vmatpush.bf16.msra.mxu0 %v528
    %692 = vmatpush.bf16.msra.mxu0 %v527
    %693 = vmatmul.bf16.gmra.mxu0 %v213
    %v694 = vpop.f32.mrf.mxu0
    %v695 = vadd.f32 %v682, %v694
    %v696 = vpop.f32.mrf.mxu0
    %697 = vdwg.mxu0
    %698 = vmatpush.bf16.msra.mxu0 %v542
    %699 = vmatpush.bf16.msra.mxu0 %v541
    %700 = vmatpush.bf16.msra.mxu0 %v540
    %701 = vmatpush.bf16.msra.mxu0 %v539
    %702 = vmatpush.bf16.msra.mxu0 %v538
    %703 = vmatpush.bf16.msra.mxu0 %v537
    %704 = vmatpush.bf16.msra.mxu0 %v536
    %705 = vmatpush.bf16.msra.mxu0 %v535
    %706 = vmatmul.bf16.gmra.mxu0 %v214
    %v707 = vpop.f32.mrf.mxu0
    %v708 = vadd.f32 %v695, %v707
    %v709 = vpop.f32.mrf.mxu0
    %710 = vdwg.mxu0
    %v711 = vadd.f32 %v62, %v708
    %vm712 = vcmask 130048
    %713 = vst.msk [vmem:[#allocation2] sm:$0xff] %vm712, %v711
    // Predicated region
    $region14: #{tpu_custom_call.1} parent=1 // pred_check
      _
    $region15: #{tpu_custom_call.1} parent=1 // pred_check_branch
      %715 = sbr.rel (0) target = $region17
    $region16: #{tpu_custom_call.1} parent=1 // pred_region
      %717 = vsyncadd [#allocation3], 0
      %s719 = sshll.u32 [#allocation2], 4
      %s720 = int_to_ptr.vmem [resolvable:$true] %s719
      %s721 = sshll.u32 %s2, 4
      %s722 = int_to_ptr.hbm [resolvable:$true] %s721
      %724 = dma.vmem_to_hbm [thread:$0]  %s720, 128, %s722, [#allocation3]
    $region17: #{tpu_custom_call.1} parent=1 // pred_fallthru
      _
    // Predicated region
    $region18: #{tpu_custom_call.1} parent=1 // pred_check
      _
    $region19: #{tpu_custom_call.1} parent=1 // pred_check_branch
      %726 = sbr.rel (0) target = $region21
    $region20: #{tpu_custom_call.1} parent=1 // pred_region
      %728 = dma.done [#allocation3], 128
    $region21: #{tpu_custom_call.1} parent=1 // pred_fallthru
      _
    %729 = vsyncpa [#allocation3], 1

</llo_original>
